<compile_context>
chip_gen: v5e
topology: v5e:2x2
jax: 0.10.0
libtpu: 0.0.40
codegen_flags: <defaults>
</compile_context>

<pallas_src>
import functools

import jax
import jax.numpy as jnp
from jax.experimental import pallas as pl
from jax.experimental.pallas import tpu as pltpu

LN_EPS = 1e-5  # nn.LayerNorm default


def _encoder_layer_kernel(x_ref, w_ref, p_ref, o_ref):
    """One row-tile of the encoder layer.

    x_ref: (tm, D)  input rows (f32)
    w_ref: (D, D)   folded merge_proj weight, (in, out) layout, bf16
    p_ref: (3, D)   packed [bias, ln_gamma, ln_beta] (f32)
    o_ref: (tm, D)  output rows
    """
    x = x_ref[...].astype(jnp.float32)                       # f32 copy for residual/LN

    # merge_proj with the duplicated-input concat folded into the weight:
    #   concat([x, x]) @ W == x @ (W_top + W_bottom)
    # bf16 operands on the MXU, f32 accumulation.
    merged = jnp.dot(x.astype(w_ref.dtype), w_ref[...],
                     preferred_element_type=jnp.float32)     # (tm, D) f32

    p = p_ref[...].astype(jnp.float32)                       # (3, D)
    bias = p[0:1, :]
    gamma = p[1:2, :]
    beta = p[2:3, :]

    # residual add (stoch_layer_coeff = 1.0, dropout identity at inference)
    y = x + merged + bias

    # norm_final: LayerNorm over the feature axis (f32)
    mean = jnp.mean(y, axis=-1, keepdims=True)
    cent = y - mean
    var = jnp.mean(cent * cent, axis=-1, keepdims=True)
    out = cent * jax.lax.rsqrt(var + LN_EPS) * gamma + beta

    o_ref[...] = out.astype(o_ref.dtype)


def _choose_row_tile(rows, row_tile):
    """Row tile: multiple of 8 sublanes, >=2 grid steps when rows allow (v7x)."""
    tm = min(row_tile, rows)
    if rows % 8 == 0:
        tm = max(8, (tm // 8) * 8)
        if rows // tm < 2 and rows >= 16:
            tm = max(8, ((rows // 2) // 8) * 8)
    return tm


@functools.partial(jax.jit, static_argnames=("row_tile",))
def my_encoder_layer_forward(x, mask, pos_emb, params, row_tile=256):
    """Pallas-backed forward of MyEncoderLayer.

    Args:
      x:        (B, T, D) float32
      mask:     (B, T, T) bool  -- passed through unchanged
      pos_emb:  unused (attn branch is None)
      params:   dict with 'merge_w' (D, 2D) [torch Linear layout: (out, in)],
                'merge_b' (D,), 'ln_gamma' (D,), 'ln_beta' (D,)
    Returns:
      (out, mask, info) mirroring the PyTorch module's return tuple
      (info is () since experts is None).
    """
    del pos_emb
    B, T, D = x.shape
    rows = B * T
    x2d = x.reshape(rows, D)

    # Fold the duplicated-input concat into the weight and cast to bf16:
    # (D, 2D) torch (out, in) -> (D, D) (in, out).
    w = params["merge_w"]
    w_fold = (w[:, :D] + w[:, D:]).T.astype(jnp.bfloat16)    # (D, D)

    # Pack bias / gamma / beta into a single (3, D) block.
    pvec = jnp.stack(
        [params["merge_b"], params["ln_gamma"], params["ln_beta"]],
        axis=0).astype(jnp.float32)                          # (3, D)

    tm = _choose_row_tile(rows, row_tile)
    grid = (pl.cdiv(rows, tm),)

    # Weight block index is constant across the grid; single-buffer it when it
    # is large so the resident weight fits v7x's 64 MiB VMEM.
    if D >= 2048:
        w_spec = pl.BlockSpec((D, D), lambda i: (0, 0),
                              pipeline_mode=pl.Buffered(1))
        w_bufs = 1
    else:
        w_spec = pl.BlockSpec((D, D), lambda i: (0, 0))
        w_bufs = 2

    # Explicit VMEM budget (default scoped limit is well below physical).
    out_itemsize = jnp.dtype(x.dtype).itemsize
    vmem_est = (2 * tm * D * 4                 # x tiles, double-buffered, f32
                + 2 * tm * D * out_itemsize    # out tiles, double-buffered
                + w_bufs * D * D * 2           # bf16 folded weight
                + 2 * 8 * D * 4)               # packed params (sublane-padded)
    vmem_limit = int(min(max(2 * vmem_est, 32 * 1024 * 1024),
                         64 * 1024 * 1024))

    out2d = pl.pallas_call(
        _encoder_layer_kernel,
        out_shape=jax.ShapeDtypeStruct((rows, D), x.dtype),
        grid_spec=pltpu.PrefetchScalarGridSpec(
            num_scalar_prefetch=0,
            grid=grid,
            in_specs=[
                pl.BlockSpec((tm, D), lambda i: (i, 0)),     # x rows
                w_spec,                                      # folded weight (bf16)
                pl.BlockSpec((3, D), lambda i: (0, 0)),      # bias/gamma/beta
            ],
            out_specs=pl.BlockSpec((tm, D), lambda i: (i, 0)),
        ),
        compiler_params=pltpu.CompilerParams(
            dimension_semantics=("parallel",),
            vmem_limit_bytes=vmem_limit),
    )(x2d, w_fold, pvec)

    out = out2d.reshape(B, T, D)
    info = ()  # experts is None
    return out, mask, info


def init_params(key, size):
    """Deterministic parameter init matching the module's __init__ shapes."""
    k1, k2, _ = jax.random.split(key, 3)
    bound = 1.0 / jnp.sqrt(2.0 * size)
    merge_w = jax.random.uniform(k1, (size, 2 * size), jnp.float32, -bound, bound)
    merge_b = jax.random.uniform(k2, (size,), jnp.float32, -bound, bound)
    ln_gamma = jnp.ones((size,), jnp.float32)
    ln_beta = jnp.zeros((size,), jnp.float32)
    return {"merge_w": merge_w, "merge_b": merge_b,
            "ln_gamma": ln_gamma, "ln_beta": ln_beta}


def _reference_forward_f32(x, params):
    """Pure-JAX f32 reference of the PyTorch forward path."""
    xc = jnp.concatenate([x, x], axis=-1)
    merged = xc @ params["merge_w"].T + params["merge_b"]
    y = x + merged
    mean = jnp.mean(y, axis=-1, keepdims=True)
    var = jnp.mean((y - mean) ** 2, axis=-1, keepdims=True)
    yn = (y - mean) / jnp.sqrt(var + LN_EPS)
    return yn * params["ln_gamma"] + params["ln_beta"]


def _reference_forward_matched(x, params):
    """Reference using the same math as the kernel (folded weight, bf16 matmul)."""
    D = x.shape[-1]
    w = params["merge_w"]
    w_fold = (w[:, :D] + w[:, D:]).T.astype(jnp.bfloat16)
    merged = jnp.dot(x.reshape(-1, D).astype(jnp.bfloat16), w_fold,
                     preferred_element_type=jnp.float32).reshape(x.shape)
    y = x + merged + params["merge_b"]
    mean = jnp.mean(y, axis=-1, keepdims=True)
    cent = y - mean
    var = jnp.mean(cent * cent, axis=-1, keepdims=True)
    out = cent * jax.lax.rsqrt(var + LN_EPS)
    return out * params["ln_gamma"] + params["ln_beta"]


if __name__ == "__main__":
    B, T, D = 2, 8, 32  # batch, time, size
    key = jax.random.PRNGKey(0)
    kx, kp = jax.random.split(key)

    x = jax.random.normal(kx, (B, T, D), jnp.float32)
    mask = jnp.ones((B, T, T), dtype=jnp.bool_)
    pos_emb = jnp.zeros((1, T, D), jnp.float32)  # unused (attn is None)
    params = init_params(kp, D)

    out, out_mask, info = my_encoder_layer_forward(x, mask, pos_emb, params)
    out = jax.block_until_ready(out)

    ref_match = _reference_forward_matched(x, params)
    ref_f32 = _reference_forward_f32(x, params)

    assert out.shape == (B, T, D)
    assert out_mask.shape == (B, T, T)
    assert info == ()
    # Tight check against a reference doing the identical (bf16-matmul) math.
    assert jnp.allclose(out, ref_match, atol=1e-4, rtol=1e-4), "mismatch vs matched reference"
    # Looser check against the exact f32 PyTorch-semantics reference
    # (bf16 matmul operands introduce ~1e-3 level differences).
    assert jnp.allclose(out, ref_f32, atol=5e-2, rtol=5e-2), "mismatch vs f32 reference"

    print("KERNEL_OK")
</pallas_src>

<mosaic_0001>
module attributes {stable_mosaic.version = 11 : i64} {
  func.func @_encoder_layer_kernel(%arg0: i32, %arg1: memref<8x32xf32, #tpu.memory_space<vmem>>, %arg2: memref<32x32xbf16, #tpu.memory_space<vmem>>, %arg3: memref<3x32xf32, #tpu.memory_space<vmem>>, %arg4: memref<8x32xf32, #tpu.memory_space<vmem>>) attributes {dimension_semantics = [#tpu.dimension_semantics<parallel>], iteration_bounds = array<i64: 2>, scalar_prefetch = 0 : i64, scratch_operands = 0 : i64, tpu.core_type = #tpu.core_type<tc>, window_params = [{transform_indices = @transform_0, window_bounds = array<i64: 8, 32>}, {pipeline_mode = #tpu.pipeline_mode<synchronous>, transform_indices = @transform_1, window_bounds = array<i64: 32, 32>}, {pipeline_mode = #tpu.pipeline_mode<synchronous>, transform_indices = @transform_2, window_bounds = array<i64: 3, 32>}, {transform_indices = @transform_3, window_bounds = array<i64: 8, 32>}]} {
    %c0 = arith.constant 0 : index
    %c0_0 = arith.constant 0 : index
    %0 = vector.load %arg1[%c0, %c0_0] : memref<8x32xf32, #tpu.memory_space<vmem>>, vector<8x32xf32>
    %1 = arith.truncf %0 : vector<8x32xf32> to vector<8x32xbf16>
    %c0_1 = arith.constant 0 : index
    %c0_2 = arith.constant 0 : index
    %2 = vector.load %arg2[%c0_1, %c0_2] : memref<32x32xbf16, #tpu.memory_space<vmem>>, vector<32x32xbf16>
    %cst = arith.constant dense<0.000000e+00> : vector<8x32xf32>
    %3 = tpu.matmul %1, %2, %cst {dimension_numbers = #tpu.dot_dimension_numbers<[1], [0], [0], [1], [0, 0, 1, 1], [], []>} : vector<8x32xbf16>, vector<32x32xbf16>, vector<8x32xf32> -> vector<8x32xf32>
    %c0_3 = arith.constant 0 : index
    %c0_4 = arith.constant 0 : index
    %4 = vector.load %arg3[%c0_3, %c0_4] : memref<3x32xf32, #tpu.memory_space<vmem>>, vector<3x32xf32>
    %5 = vector.extract_strided_slice %4 {offsets = [0, 0], sizes = [1, 32], strides = [1, 1]} : vector<3x32xf32> to vector<1x32xf32>
    %6 = vector.extract_strided_slice %4 {offsets = [1, 0], sizes = [1, 32], strides = [1, 1]} : vector<3x32xf32> to vector<1x32xf32>
    %7 = vector.extract_strided_slice %4 {offsets = [2, 0], sizes = [1, 32], strides = [1, 1]} : vector<3x32xf32> to vector<1x32xf32>
    %8 = arith.addf %0, %3 : vector<8x32xf32>
    %9 = vector.broadcast %5 : vector<1x32xf32> to vector<8x32xf32>
    %10 = arith.addf %8, %9 : vector<8x32xf32>
    %cst_5 = arith.constant dense<0.000000e+00> : vector<8xf32>
    %11 = vector.multi_reduction <add>, %10, %cst_5 [1] : vector<8x32xf32> to vector<8xf32>
    %12 = vector.shape_cast %11 : vector<8xf32> to vector<8x1xf32>
    %cst_6 = arith.constant 3.200000e+01 : f32
    %13 = vector.broadcast %cst_6 : f32 to vector<8x1xf32>
    %14 = arith.divf %12, %13 : vector<8x1xf32>
    %15 = vector.broadcast %14 : vector<8x1xf32> to vector<8x32xf32>
    %16 = arith.subf %10, %15 : vector<8x32xf32>
    %17 = arith.mulf %16, %16 : vector<8x32xf32>
    %cst_7 = arith.constant dense<0.000000e+00> : vector<8xf32>
    %18 = vector.multi_reduction <add>, %17, %cst_7 [1] : vector<8x32xf32> to vector<8xf32>
    %19 = vector.shape_cast %18 : vector<8xf32> to vector<8x1xf32>
    %cst_8 = arith.constant 3.200000e+01 : f32
    %20 = vector.broadcast %cst_8 : f32 to vector<8x1xf32>
    %21 = arith.divf %19, %20 : vector<8x1xf32>
    %cst_9 = arith.constant 9.99999974E-6 : f32
    %22 = vector.broadcast %cst_9 : f32 to vector<8x1xf32>
    %23 = arith.addf %21, %22 : vector<8x1xf32>
    %24 = math.rsqrt %23 : vector<8x1xf32>
    %25 = vector.broadcast %24 : vector<8x1xf32> to vector<8x32xf32>
    %26 = arith.mulf %16, %25 : vector<8x32xf32>
    %27 = vector.broadcast %6 : vector<1x32xf32> to vector<8x32xf32>
    %28 = arith.mulf %26, %27 : vector<8x32xf32>
    %29 = vector.broadcast %7 : vector<1x32xf32> to vector<8x32xf32>
    %30 = arith.addf %28, %29 : vector<8x32xf32>
    %c0_10 = arith.constant 0 : index
    %c0_11 = arith.constant 0 : index
    %31 = vector.load %arg4[%c0_10, %c0_11] : memref<8x32xf32, #tpu.memory_space<vmem>>, vector<8x32xf32>
    tpu.vector_store %arg4[%c0_10, %c0_11], %30 {strides = array<i32>} : memref<8x32xf32, #tpu.memory_space<vmem>>, vector<8x32xf32>,
    return
  }
  func.func @transform_0(%arg0: i32) -> (i32, i32) {
    %c0_i32 = arith.constant 0 : i32
    %c0_i32_0 = arith.constant 0 : i32
    return %arg0, %c0_i32 : i32, i32
  }
  func.func @transform_1(%arg0: i32) -> (i32, i32) {
    %c0_i32 = arith.constant 0 : i32
    %c0_i32_0 = arith.constant 0 : i32
    %c0_i32_1 = arith.constant 0 : i32
    return %c0_i32, %c0_i32_0 : i32, i32
  }
  func.func @transform_2(%arg0: i32) -> (i32, i32) {
    %c0_i32 = arith.constant 0 : i32
    %c0_i32_0 = arith.constant 0 : i32
    %c0_i32_1 = arith.constant 0 : i32
    return %c0_i32, %c0_i32_0 : i32, i32
  }
  func.func @transform_3(%arg0: i32) -> (i32, i32) {
    %c0_i32 = arith.constant 0 : i32
    %c0_i32_0 = arith.constant 0 : i32
    return %arg0, %c0_i32 : i32, i32
  }
}

</mosaic_0001>

<llo_original>
// kernel: my_encoder_layer_forward.1
$region0: #{my_encoder_layer_forward.1}
  #allocation0 [shape = 'u32[]', space=smem, size = 0x4, offset = 0x4, fixed_abs, tag = 'smem constant byte address 0x4 - core index']
  #allocation1 [shape = 'u32[72,128]{1,0:T(1,128)}', space=vmem, size = 0x9000, scoped, tag = 'internal scratch']
  %s0 = inlined_call_operand.vmem [shape: f32[16,32], index: 0, kind: input, shape index: {}]
  %s1 = inlined_call_operand.vmem [shape: bf16[32,32], index: 1, kind: input, shape index: {}]
  %s2 = inlined_call_operand.vmem [shape: f32[3,32], index: 2, kind: input, shape index: {}]
  %s3 = inlined_call_operand.hbm [shape: f32[16,32], index: 3, kind: output, shape index: {}]
  %s4 = sld [smem:[#allocation0]]
  $region45: #{my_encoder_layer_forward.1} parent=0
    _
  %s6 = ssub.s32 1, %s4
  %s7 = scalar_select 0, %s6, %s4
  $region1: #{my_encoder_layer_forward.1} parent=0
    #allocation2 [shape = 'u8[8192]{0}', space=vmem, size = 0x2000, scoped, tag = 'output window, operand 0']
    #allocation3 [shape = 's32[2]{0}', space=sflag, size = 0x8, scoped, tag = 'scoped memory for my_encoder_layer_forward.1']
    %8 = vsyncpa [#allocation3], 0
    %s9 = scalar_lea.sflag [#allocation3], 1
    %10 = vsyncpa %s9, 0
    loop: start=0, step=1, limit=4
    $region2: #{my_encoder_layer_forward.1} parent=1 // loop_pre_header
      _
    $region3: #{my_encoder_layer_forward.1} parent=1 // loop_header
      %s12 = sphi 0, %s16
      %p13 = scmp.ge.s32.totalorder %s12, 4
      %s22 = sphi 0, %s24
      %s25 = sphi 0, %s22
      %s26 = sphi 0, %s25
      %s42 = sphi 0, %s26
      %s46 = sphi 0, %s46
      %s48 = sphi 0, %s46
      %s49 = sphi 0, %s48
      %s63 = sphi 0, %s49
      %s67 = sphi 0, %s67
      %s69 = sphi 0, %s67
      %s70 = sphi 0, %s69
      %s84 = sphi 0, %s70
      %s90 = sphi 0, %s92
      %s93 = sphi 0, %s90
      %s94 = sphi 0, %s93
      %s110 = sphi 0, %s94
    $region4: #{my_encoder_layer_forward.1} parent=1 // loop_header_branch
      %15 = sbr.rel (%p13) target = $region8
    $region5: #{my_encoder_layer_forward.1} parent=1 // loop_body
      %s17 = ssub.s32 %s12, 1
      %s18 = ssub.s32 %s12, 2
      %s19 = sadd.s32 %s12, 1
      %s20 = ssub.s32 %s12, %s19
      %p21 = scmp.eq.s32.totalorder %s20, 0
      %s23 = sadd.s32 %s22, 1
      %s24 = scalar_select %p21, %s22, %s23
      %p27 = pneg %p21
      %p28 = scmp.eq.s32.totalorder %s12, 1
      %p29 = por %p27, %p28
      %p30 = scmp.ne.s32.totalorder %s22, %s25
      %p31 = scmp.eq.s32.totalorder %s12, 0
      %p32 = por %p30, %p31
      %p33 = scmp.ne.s32.totalorder %s22, %s25
      %p34 = scmp.eq.s32.totalorder %s17, 1
      %p35 = por %p33, %p34
      %p36 = scmp.ne.s32.totalorder %s25, %s26
      %p37 = scmp.eq.s32.totalorder %s17, 0
      %p38 = por %p36, %p37
      %p39 = scmp.ne.s32.totalorder %s25, %s26
      %p40 = scmp.eq.s32.totalorder %s18, 1
      %p41 = por %p39, %p40
      %p43 = scmp.ne.s32.totalorder %s26, %s42
      %p44 = scmp.eq.s32.totalorder %s18, 0
      %p45 = por %p43, %p44
      %s47 = sadd.s32 %s46, 1
      %p50 = scmp.eq.s32.totalorder %s12, 1
      %p51 = scmp.ne.s32.totalorder %s46, %s48
      %p52 = scmp.eq.s32.totalorder %s12, 0
      %p53 = por %p51, %p52
      %p54 = scmp.ne.s32.totalorder %s46, %s48
      %p55 = scmp.eq.s32.totalorder %s17, 1
      %p56 = por %p54, %p55
      %p57 = scmp.ne.s32.totalorder %s48, %s49
      %p58 = scmp.eq.s32.totalorder %s17, 0
      %p59 = por %p57, %p58
      %p60 = scmp.ne.s32.totalorder %s48, %s49
      %p61 = scmp.eq.s32.totalorder %s18, 1
      %p62 = por %p60, %p61
      %p64 = scmp.ne.s32.totalorder %s49, %s63
      %p65 = scmp.eq.s32.totalorder %s18, 0
      %p66 = por %p64, %p65
      %s68 = sadd.s32 %s67, 1
      %p71 = scmp.eq.s32.totalorder %s12, 1
      %p72 = scmp.ne.s32.totalorder %s67, %s69
      %p73 = scmp.eq.s32.totalorder %s12, 0
      %p74 = por %p72, %p73
      %p75 = scmp.ne.s32.totalorder %s67, %s69
      %p76 = scmp.eq.s32.totalorder %s17, 1
      %p77 = por %p75, %p76
      %p78 = scmp.ne.s32.totalorder %s69, %s70
      %p79 = scmp.eq.s32.totalorder %s17, 0
      %p80 = por %p78, %p79
      %p81 = scmp.ne.s32.totalorder %s69, %s70
      %p82 = scmp.eq.s32.totalorder %s18, 1
      %p83 = por %p81, %p82
      %p85 = scmp.ne.s32.totalorder %s70, %s84
      %p86 = scmp.eq.s32.totalorder %s18, 0
      %p87 = por %p85, %p86
      %s88 = ssub.s32 %s12, %s19
      %p89 = scmp.eq.s32.totalorder %s88, 0
      %s91 = sadd.s32 %s90, 1
      %s92 = scalar_select %p89, %s90, %s91
      %p95 = pneg %p89
      %p96 = scmp.eq.s32.totalorder %s12, 1
      %p97 = por %p95, %p96
      %p98 = scmp.ne.s32.totalorder %s90, %s93
      %p99 = scmp.eq.s32.totalorder %s12, 0
      %p100 = por %p98, %p99
      %p101 = scmp.ne.s32.totalorder %s90, %s93
      %p102 = scmp.eq.s32.totalorder %s17, 1
      %p103 = por %p101, %p102
      %p104 = scmp.ne.s32.totalorder %s93, %s94
      %p105 = scmp.eq.s32.totalorder %s17, 0
      %p106 = por %p104, %p105
      %p107 = scmp.ne.s32.totalorder %s93, %s94
      %p108 = scmp.eq.s32.totalorder %s18, 1
      %p109 = por %p107, %p108
      %p111 = scmp.ne.s32.totalorder %s94, %s110
      %p112 = scmp.eq.s32.totalorder %s18, 0
      %p113 = por %p111, %p112
      %p114 = scmp.le.s32.totalorder 1, %s12
      %p115 = scmp.lt.s32.totalorder %s12, 3
      %p116 = pnand %p114, %p115
      %p117 = pneg %p116
      // Predicated region
      $region9: #{my_encoder_layer_forward.1} parent=5 // pred_check
        _
      $region10: #{my_encoder_layer_forward.1} parent=5 // pred_check_branch
        %119 = sbr.rel (%p116) target = $region12
      $region11: #{my_encoder_layer_forward.1} parent=5 // pred_region
        %s120 = ssub.s32 %s12, 1
        // Predicated region
        $region13: #{my_encoder_layer_forward.1} parent=11 // pred_check
          %p121 = pneg %p59
        $region14: #{my_encoder_layer_forward.1} parent=11 // pred_check_branch
          %123 = sbr.rel (%p121) target = $region16
        $region15: #{my_encoder_layer_forward.1} parent=11 // pred_region
          _
        $region16: #{my_encoder_layer_forward.1} parent=11 // pred_fallthru
          _
        // Predicated region
        $region17: #{my_encoder_layer_forward.1} parent=11 // pred_check
          %p124 = pneg %p80
        $region18: #{my_encoder_layer_forward.1} parent=11 // pred_check_branch
          %126 = sbr.rel (%p124) target = $region20
        $region19: #{my_encoder_layer_forward.1} parent=11 // pred_region
          _
        $region20: #{my_encoder_layer_forward.1} parent=11 // pred_fallthru
          _
      $region12: #{my_encoder_layer_forward.1} parent=5 // pred_fallthru
        _
      %p127 = scmp.lt.s32.totalorder %s12, 2
      // Predicated region
      $region21: #{my_encoder_layer_forward.1} parent=5 // pred_check
        %p128 = pneg %p127
      $region22: #{my_encoder_layer_forward.1} parent=5 // pred_check_branch
        %130 = sbr.rel (%p128) target = $region24
      $region23: #{my_encoder_layer_forward.1} parent=5 // pred_region
        // Predicated region
        $region25: #{my_encoder_layer_forward.1} parent=23 // pred_check
          %p131 = pneg %p32
        $region26: #{my_encoder_layer_forward.1} parent=23 // pred_check_branch
          %133 = sbr.rel (%p131) target = $region28
        $region27: #{my_encoder_layer_forward.1} parent=23 // pred_region
          %p134 = scmp.lt.s32.totalorder %s12, 1
          %s135 = scalar_select %p134, %s12, 1
          %s136 = smul.addr %s135, 8
          %s137 = scalar_lea.vmem %s0, %s136
        $region28: #{my_encoder_layer_forward.1} parent=23 // pred_fallthru
          _
      $region24: #{my_encoder_layer_forward.1} parent=5 // pred_fallthru
        _
      %p138 = scmp.le.s32.totalorder 1, %s12
      %p139 = scmp.lt.s32.totalorder %s12, 3
      %p140 = pnand %p138, %p139
      %p141 = pneg %p140
      // Predicated region
      $region29: #{my_encoder_layer_forward.1} parent=5 // pred_check
        _
      $region30: #{my_encoder_layer_forward.1} parent=5 // pred_check_branch
        %143 = sbr.rel (%p140) target = $region32
      $region31: #{my_encoder_layer_forward.1} parent=5 // pred_region
        %s144 = ssub.s32 %s12, 1
        %p145 = scmp.lt.s32.totalorder %s17, 1
        %s146 = scalar_select %p145, %s17, 1
        %s147 = smul.addr %s146, 8
        %s148 = scalar_lea.vmem %s0, %s147
        %p149 = pneg %p38
        %p150 = pneg %p35
        %p151 = pneg %p59
        %p152 = pneg %p56
        %p153 = pneg %p80
        %p154 = pneg %p77
        %p155 = pneg %p106
        %p156 = pneg %p103
        %s157 = sand.u32 %s93, 1
        %s158 = scalar_lea.sflag [#allocation3], %s157
        %s159 = sand.u32 %s93, 1
        %s160 = smul.addr %s159, 8
        %s161 = scalar_lea.vmem [#allocation2], %s160
        %p162 = scmp.lt.s32.totalorder %s17, 1
        %s163 = scalar_select %p162, %s17, 1
        %s164 = smul.addr %s163, 8
        %s165 = scalar_lea.vmem %s0, %s164
        %v167 = vld [vmem:[%s165] sm:$0xff]
        %v168 = vpack.c.bf16 %v167, %v167
        %v169 = vld [vmem:[%s1] sm:$0xf]
        %v170 = vld [vmem:[%s1 + $0x4] sm:$0xf]
        %v171 = vld [vmem:[%s1 + $0x8] sm:$0xf]
        %v172 = vld [vmem:[%s1 + $0xc] sm:$0xf]
        %v177 = vunpack.c.l.b16 %v169
        %v178 = vunpack.c.l.b16 %v170
        %v179 = vunpack.c.l.b16 %v171
        %v180 = vunpack.c.l.b16 %v172
        %v181 = vpack.c.b16 %v178, %v177
        %v182 = vpack.c.b16 %v180, %v179
        %vm185 = vcmask 261120
        %v187 = vsel %vm185, %v168, 0
        %189 = vmatpush.bf16.msra.mxu0 0
        %190 = vmatpush.bf16.msra.mxu0 0
        %191 = vmatpush.bf16.msra.mxu0 0
        %192 = vmatpush.bf16.msra.mxu0 0
        %193 = vmatpush.bf16.msra.mxu0 0
        %194 = vmatpush.bf16.msra.mxu0 0
        %195 = vmatpush.bf16.msra.mxu0 %v182
        %196 = vmatpush.bf16.msra.mxu0 %v181
        %197 = vmatmul.bf16.gmra.mxu0 %v187
        %v198 = vpop.f32.mrf.mxu0
        %v199 = vadd.f32 0.0, %v198
        %v200 = vpop.f32.mrf.mxu0
        %201 = vdwg.mxu0
        %v202 = vld [vmem:[%s2] sm:$0x7]
        %v203 = vadd.f32 %v167, %v199
        %v204 = vperm.slane %v202, 0
        %v205 = vadd.f32 %v203, %v204
        %v206 = vsel %vm185, %v205, 0.0
        %207 = vadd.xlane.f32.xlu0 %v206
        %v208 = vpop.xlane.xlu0 %207
        %v209 = vrcp.pop 32.0
        %v210 = vmul.f32 32.0, %v209
        %v211 = vsub.f32 1.0, %v210
        %v212 = vmul.f32 %v209, %v211
        %v213 = vadd.f32 %v209, %v212
        %vm214 = vweird.f32 %v209
        %v215 = vsel %vm214, %v209, %v213
        %v216 = vmul.f32 %v208, %v215
        %v217 = vsub.f32 %v205, %v216
        %v218 = vmul.f32 %v217, %v217
        %v219 = vsel %vm185, %v218, 0.0
        %220 = vadd.xlane.f32.xlu0 %v219
        %v221 = vpop.xlane.xlu0 %220
        %v222 = vmul.f32 %v221, %v215
        %v223 = vadd.f32 %v222, 1e-05
        %v224 = vrsqrt.pop %v223
        %v225 = vmul.f32 %v224, %v223
        %v226 = vmul.f32 %v225, %v224
        %v227 = vmul.f32 0.5, %v226
        %v228 = vsub.f32 1.5, %v227
        %v229 = vmul.f32 %v224, %v228
        %vm230 = vweird.f32 %v223
        %vm231 = vweird.f32 %v224
        %vm232 = vmor %vm230, %vm231
        %v233 = vsel %vm232, %v224, %v229
        %v234 = vmul.f32 %v217, %v233
        %v235 = vperm.slane %v202, 1
        %v236 = vmul.f32 %v234, %v235
        %v237 = vperm.slane %v202, 2
        %v238 = vadd.f32 %v236, %v237
        %239 = vst.msk [vmem:[%s161] sm:$0xff] %vm185, %v238
        %s240 = sand.u32 %s93, 1
        %s241 = scalar_lea.sflag [#allocation3], %s240
        %s242 = sand.u32 %s93, 1
        %s243 = smul.addr %s242, 8
        %s244 = scalar_lea.vmem [#allocation2], %s243
        // Predicated region
        $region33: #{my_encoder_layer_forward.1} parent=31 // pred_check
          %p245 = pneg %p103
        $region34: #{my_encoder_layer_forward.1} parent=31 // pred_check_branch
          %247 = sbr.rel (%p245) target = $region36
        $region35: #{my_encoder_layer_forward.1} parent=31 // pred_region
          %249 = vsyncadd %s241, 0
          %s250 = smul.addr %s17, 8
          %s251 = scalar_lea.hbm %s3, %s250
          %s253 = sshll.u32 %s244, 4
          %s254 = int_to_ptr.vmem [resolvable:$true] %s253
          %s255 = sshll.u32 %s251, 4
          %s256 = int_to_ptr.hbm [resolvable:$true] %s255
          %258 = dma.vmem_to_hbm [thread:$0]  %s254, 128, %s256, %s241
        $region36: #{my_encoder_layer_forward.1} parent=31 // pred_fallthru
          _
      $region32: #{my_encoder_layer_forward.1} parent=5 // pred_fallthru
        _
      %p259 = scmp.le.s32.totalorder 2, %s12
      // Predicated region
      $region37: #{my_encoder_layer_forward.1} parent=5 // pred_check
        %p260 = pneg %p259
      $region38: #{my_encoder_layer_forward.1} parent=5 // pred_check_branch
        %262 = sbr.rel (%p260) target = $region40
      $region39: #{my_encoder_layer_forward.1} parent=5 // pred_region
        %s263 = ssub.s32 %s12, 2
        // Predicated region
        $region41: #{my_encoder_layer_forward.1} parent=39 // pred_check
          %p264 = pneg %p109
        $region42: #{my_encoder_layer_forward.1} parent=39 // pred_check_branch
          %266 = sbr.rel (%p264) target = $region44
        $region43: #{my_encoder_layer_forward.1} parent=39 // pred_region
          %s267 = sand.u32 %s94, 1
          %s268 = scalar_lea.sflag [#allocation3], %s267
          %s269 = sand.u32 %s94, 1
          %s270 = smul.addr %s269, 8
          %s271 = scalar_lea.vmem [#allocation2], %s270
          %273 = dma.done %s268, 128
        $region44: #{my_encoder_layer_forward.1} parent=39 // pred_fallthru
          _
      $region40: #{my_encoder_layer_forward.1} parent=5 // pred_fallthru
        _
    $region6: #{my_encoder_layer_forward.1} parent=1 // loop_footer
      %s16 = sadd.s32 1, %s12
    $region7: #{my_encoder_layer_forward.1} parent=1 // loop_footer_branch
      %11 = sbr.rel target = $region3
    $region8: #{my_encoder_layer_forward.1} parent=1 // loop_exit
      _
    %274 = vsyncpa [#allocation3], 1
    %s275 = scalar_lea.sflag [#allocation3], 1
    %276 = vsyncpa %s275, 1

</llo_original>
